<compile_context>
chip_gen: v7x
topology: tpu7x:2x2x1
jax: 0.10.0
libtpu: 0.0.40
codegen_flags: <defaults>
</compile_context>

<pallas_src>
import functools

import numpy as np

import jax
import jax.numpy as jnp
from jax.experimental import pallas as pl
from jax.experimental.pallas import tpu as pltpu


def _round_up(x, m):
    return ((x + m - 1) // m) * m


# --------------------------------------------------------------------------- #
# Kernel
# --------------------------------------------------------------------------- #
def _affine_half_flow_kernel(dim, x_ref, w_ref, b_ref, z_ref, ld_ref):
    """One batch tile: fused s/t MLP (4 matmuls) + affine combine + log-det.

    x_ref : (bt, dim)      halves layout [even | odd] of the input rows
    w_ref : (4, P, P)      fused, zero-padded weight slab (parity baked in)
    b_ref : (4, P)         fused, zero-padded bias slab
    z_ref : (bt, dim)      output z (cat layout, matches torch.cat([z0, z1], 1))
    ld_ref: (bt, 1)        per-row log|det J| = sum(s)
    """
    xin = x_ref[...]                                              # (bt, dim)

    # Layer 1: de-interleave + parity folded into the weight rows.
    h = jnp.dot(xin, w_ref[0, :dim, :],
                preferred_element_type=jnp.float32) + b_ref[0:1, :]
    h = jnp.maximum(h, 0.2 * h)                                   # LeakyReLU(0.2)

    # Layers 2, 3 (block-diagonal s|t hidden layers), padded to (P, P).
    for li in (1, 2):
        h = jnp.dot(h, w_ref[li],
                    preferred_element_type=jnp.float32) + b_ref[li:li + 1, :]
        h = jnp.maximum(h, 0.2 * h)

    # Layer 4: outputs s at the affine lanes of cols [0, dim) and t at the
    # affine lanes of cols [dim, 2*dim); all other lanes are exactly zero.
    out = jnp.dot(h, w_ref[3],
                  preferred_element_type=jnp.float32) + b_ref[3:4, :]
    s_pos = out[:, 0:dim]                                         # (bt, dim)
    t_pos = out[:, dim:2 * dim]                                   # (bt, dim)

    # Affine coupling, full width, single store:
    #   affine lanes: exp(s) * x1 + t ;  pass-through lanes: exp(0) * x0 + 0 = x0
    z_ref[...] = jnp.exp(s_pos) * xin + t_pos
    ld_ref[...] = jnp.sum(s_pos, axis=1, keepdims=True)


# --------------------------------------------------------------------------- #
# Parameter packing (host side, done once)
# --------------------------------------------------------------------------- #
def init_mlp_params(key, nin, nout, nh):
    """Deterministic 4-layer MLP params; weights stored (in, out), biases (1, out)."""
    ks = jax.random.split(key, 8)
    dims = [(nin, nh), (nh, nh), (nh, nh), (nh, nout)]
    params = []
    for i, (di, do) in enumerate(dims):
        w = jax.random.normal(ks[2 * i], (di, do), jnp.float32) * 0.1
        b = jax.random.normal(ks[2 * i + 1], (1, do), jnp.float32) * 0.1
        params += [w, b]
    return params


def _pack_fused_params(s_params, t_params, dim, nh, parity):
    """Fuse the s/t MLPs and fold parity + even/odd split into two padded slabs."""
    half = dim // 2
    two_nh = 2 * nh
    P = _round_up(max(two_nh, 2 * dim), 128)

    sw1, sb1, sw2, sb2, sw3, sb3, sw4, sb4 = [np.asarray(p, np.float32) for p in s_params]
    tw1, tb1, tw2, tb2, tw3, tb3, tw4, tb4 = [np.asarray(p, np.float32) for p in t_params]

    # xin (kernel input) is always [x_even | x_odd].  The conditioning half x0 is
    # the even lanes (parity=0) or odd lanes (parity=1); the affine output lanes
    # of z are the second half (parity=0) or first half (parity=1).
    cond_off = half if parity else 0      # where x0 lives inside xin
    aff_off = 0 if parity else half       # where z1 = exp(s)*x1 + t lives inside z

    w = np.zeros((4, P, P), np.float32)
    b = np.zeros((4, P), np.float32)

    # Layer 1: [s|t] fused, rows placed at the conditioning lanes of xin.
    w[0, cond_off:cond_off + half, 0:nh] = sw1
    w[0, cond_off:cond_off + half, nh:two_nh] = tw1
    b[0, 0:nh] = sb1.reshape(-1)
    b[0, nh:two_nh] = tb1.reshape(-1)

    # Layers 2, 3: block-diagonal so the s and t paths stay independent.
    for k, (sw, sb, tw, tb) in enumerate(
            ((sw2, sb2, tw2, tb2), (sw3, sb3, tw3, tb3)), start=1):
        w[k, 0:nh, 0:nh] = sw
        w[k, nh:two_nh, nh:two_nh] = tw
        b[k, 0:nh] = sb.reshape(-1)
        b[k, nh:two_nh] = tb.reshape(-1)

    # Layer 4: s -> affine lanes of cols [0, dim); t -> affine lanes of [dim, 2dim).
    w[3, 0:nh, aff_off:aff_off + half] = sw4
    w[3, nh:two_nh, dim + aff_off:dim + aff_off + half] = tw4
    b[3, aff_off:aff_off + half] = sb4.reshape(-1)
    b[3, dim + aff_off:dim + aff_off + half] = tb4.reshape(-1)

    return jnp.asarray(w), jnp.asarray(b)


# --------------------------------------------------------------------------- #
# Wrapper
# --------------------------------------------------------------------------- #
def affine_half_flow_forward(x, s_params, t_params, parity, *, block_rows=1024):
    """Forward pass: returns (z, log_det) matching the PyTorch module."""
    B, dim = x.shape
    assert dim % 2 == 0, "AffineHalfFlow requires an even feature dimension"
    nh = s_params[0].shape[1]

    wslab, bslab = _pack_fused_params(s_params, t_params, dim, nh, parity)
    P = wslab.shape[-1]

    # Halves ("cat") layout; parity itself is folded into the packed weights.
    xin = jnp.concatenate([x[:, ::2], x[:, 1::2]], axis=1)

    # Batch tiling: biggest tile up to `block_rows`, rounded to a sublane multiple;
    # pad the batch so it divides evenly (padded rows are discarded below).
    bt = max(8, min(_round_up(block_rows, 8), _round_up(B, 8)))
    Bp = _round_up(B, bt)
    if Bp != B:
        xin = jnp.pad(xin, ((0, Bp - B), (0, 0)))

    kernel = functools.partial(_affine_half_flow_kernel, dim)

    z, ld = pl.pallas_call(
        kernel,
        out_shape=(
            jax.ShapeDtypeStruct((Bp, dim), jnp.float32),
            jax.ShapeDtypeStruct((Bp, 1), jnp.float32),
        ),
        grid=(Bp // bt,),
        in_specs=[
            pl.BlockSpec((bt, dim), lambda i: (i, 0)),       # batch-tiled input
            pl.BlockSpec((4, P, P), lambda i: (0, 0, 0)),    # resident fused weights
            pl.BlockSpec((4, P), lambda i: (0, 0)),          # resident fused biases
        ],
        out_specs=(
            pl.BlockSpec((bt, dim), lambda i: (i, 0)),
            pl.BlockSpec((bt, 1), lambda i: (i, 0)),
        ),
        compiler_params=pltpu.CompilerParams(
            dimension_semantics=("parallel",),               # megacore on v7x
        ),
    )(xin, wslab, bslab)

    return z[:B], ld[:B, 0]


# --------------------------------------------------------------------------- #
# Pure-JAX reference (mirrors the PyTorch module)
# --------------------------------------------------------------------------- #
def _jax_reference(x, s_params, t_params, parity):
    def mlp(h, p):
        w1, b1, w2, b2, w3, b3, w4, b4 = p
        for w, b, act in ((w1, b1, True), (w2, b2, True), (w3, b3, True), (w4, b4, False)):
            h = h @ w + b
            if act:
                h = jnp.where(h > 0, h, 0.2 * h)
        return h

    x0, x1 = x[:, ::2], x[:, 1::2]
    if parity:
        x0, x1 = x1, x0
    s = mlp(x0, s_params)
    t = mlp(x0, t_params)
    z0, z1 = x0, jnp.exp(s) * x1 + t
    if parity:
        z0, z1 = z1, z0
    z = jnp.concatenate([z0, z1], axis=1)
    return z, jnp.sum(s, axis=1)


if __name__ == "__main__":
    key = jax.random.PRNGKey(0)
    k_x, k_s, k_t = jax.random.split(key, 3)

    B, dim, nh = 8, 8, 24

    x = jax.random.normal(k_x, (B, dim), jnp.float32)
    s_params = init_mlp_params(k_s, dim // 2, dim // 2, nh)
    t_params = init_mlp_params(k_t, dim // 2, dim // 2, nh)

    for parity in (0, 1):
        z, log_det = affine_half_flow_forward(x, s_params, t_params, parity)
        jax.block_until_ready((z, log_det))

        z_ref, ld_ref = _jax_reference(x, s_params, t_params, parity)
        assert jnp.allclose(z, z_ref, atol=1e-4, rtol=1e-4), f"z mismatch (parity={parity})"
        assert jnp.allclose(log_det, ld_ref, atol=1e-4, rtol=1e-4), f"log_det mismatch (parity={parity})"

    print("KERNEL_OK")
</pallas_src>

<mosaic_0001>
module attributes {stable_mosaic.version = 11 : i64} {
  func.func @_affine_half_flow_kernel(%arg0: i32, %arg1: memref<8x8xf32, #tpu.memory_space<vmem>>, %arg2: memref<4x128x128xf32, #tpu.memory_space<vmem>>, %arg3: memref<4x128xf32, #tpu.memory_space<vmem>>, %arg4: memref<8x8xf32, #tpu.memory_space<vmem>>, %arg5: memref<8x1xf32, #tpu.memory_space<vmem>>) attributes {dimension_semantics = [#tpu.dimension_semantics<parallel>], iteration_bounds = array<i64: 1>, scalar_prefetch = 0 : i64, scratch_operands = 0 : i64, tpu.core_type = #tpu.core_type<tc>, window_params = [{transform_indices = @transform_0, window_bounds = array<i64: 8, 8>}, {pipeline_mode = #tpu.pipeline_mode<synchronous>, transform_indices = @transform_1, window_bounds = array<i64: 4, 128, 128>}, {pipeline_mode = #tpu.pipeline_mode<synchronous>, transform_indices = @transform_2, window_bounds = array<i64: 4, 128>}, {transform_indices = @transform_3, window_bounds = array<i64: 8, 8>}, {transform_indices = @transform_4, window_bounds = array<i64: 8, 1>}]} {
    %c0 = arith.constant 0 : index
    %c0_0 = arith.constant 0 : index
    %0 = vector.load %arg1[%c0, %c0_0] : memref<8x8xf32, #tpu.memory_space<vmem>>, vector<8x8xf32>
    %c0_1 = arith.constant 0 : index
    %c0_2 = arith.constant 0 : index
    %c0_3 = arith.constant 0 : index
    %1 = vector.load %arg2[%c0_1, %c0_2, %c0_3] : memref<4x128x128xf32, #tpu.memory_space<vmem>>, vector<1x8x128xf32>
    %2 = vector.shape_cast %1 : vector<1x8x128xf32> to vector<8x128xf32>
    %cst = arith.constant dense<0.000000e+00> : vector<8x128xf32>
    %3 = tpu.matmul %0, %2, %cst {dimension_numbers = #tpu.dot_dimension_numbers<[1], [0], [0], [1], [0, 0, 1, 1], [], []>} : vector<8x8xf32>, vector<8x128xf32>, vector<8x128xf32> -> vector<8x128xf32>
    %c0_4 = arith.constant 0 : index
    %c0_5 = arith.constant 0 : index
    %4 = vector.load %arg3[%c0_4, %c0_5] : memref<4x128xf32, #tpu.memory_space<vmem>>, vector<1x128xf32>
    %5 = vector.broadcast %4 : vector<1x128xf32> to vector<8x128xf32>
    %6 = arith.addf %3, %5 : vector<8x128xf32>
    %cst_6 = arith.constant 2.000000e-01 : f32
    %7 = vector.broadcast %cst_6 : f32 to vector<8x128xf32>
    %8 = arith.mulf %7, %6 : vector<8x128xf32>
    %9 = arith.maximumf %6, %8 : vector<8x128xf32>
    %c1 = arith.constant 1 : index
    %c0_7 = arith.constant 0 : index
    %c0_8 = arith.constant 0 : index
    %10 = vector.load %arg2[%c1, %c0_7, %c0_8] : memref<4x128x128xf32, #tpu.memory_space<vmem>>, vector<1x128x128xf32>
    %11 = vector.shape_cast %10 : vector<1x128x128xf32> to vector<128x128xf32>
    %cst_9 = arith.constant dense<0.000000e+00> : vector<8x128xf32>
    %12 = tpu.matmul %9, %11, %cst_9 {dimension_numbers = #tpu.dot_dimension_numbers<[1], [0], [0], [1], [0, 0, 1, 1], [], []>} : vector<8x128xf32>, vector<128x128xf32>, vector<8x128xf32> -> vector<8x128xf32>
    %c1_10 = arith.constant 1 : index
    %c0_11 = arith.constant 0 : index
    %13 = vector.load %arg3[%c1_10, %c0_11] : memref<4x128xf32, #tpu.memory_space<vmem>>, vector<1x128xf32>
    %14 = vector.broadcast %13 : vector<1x128xf32> to vector<8x128xf32>
    %15 = arith.addf %12, %14 : vector<8x128xf32>
    %cst_12 = arith.constant 2.000000e-01 : f32
    %16 = vector.broadcast %cst_12 : f32 to vector<8x128xf32>
    %17 = arith.mulf %16, %15 : vector<8x128xf32>
    %18 = arith.maximumf %15, %17 : vector<8x128xf32>
    %c2 = arith.constant 2 : index
    %c0_13 = arith.constant 0 : index
    %c0_14 = arith.constant 0 : index
    %19 = vector.load %arg2[%c2, %c0_13, %c0_14] : memref<4x128x128xf32, #tpu.memory_space<vmem>>, vector<1x128x128xf32>
    %20 = vector.shape_cast %19 : vector<1x128x128xf32> to vector<128x128xf32>
    %cst_15 = arith.constant dense<0.000000e+00> : vector<8x128xf32>
    %21 = tpu.matmul %18, %20, %cst_15 {dimension_numbers = #tpu.dot_dimension_numbers<[1], [0], [0], [1], [0, 0, 1, 1], [], []>} : vector<8x128xf32>, vector<128x128xf32>, vector<8x128xf32> -> vector<8x128xf32>
    %c2_16 = arith.constant 2 : index
    %c0_17 = arith.constant 0 : index
    %22 = vector.load %arg3[%c2_16, %c0_17] : memref<4x128xf32, #tpu.memory_space<vmem>>, vector<1x128xf32>
    %23 = vector.broadcast %22 : vector<1x128xf32> to vector<8x128xf32>
    %24 = arith.addf %21, %23 : vector<8x128xf32>
    %cst_18 = arith.constant 2.000000e-01 : f32
    %25 = vector.broadcast %cst_18 : f32 to vector<8x128xf32>
    %26 = arith.mulf %25, %24 : vector<8x128xf32>
    %27 = arith.maximumf %24, %26 : vector<8x128xf32>
    %c3 = arith.constant 3 : index
    %c0_19 = arith.constant 0 : index
    %c0_20 = arith.constant 0 : index
    %28 = vector.load %arg2[%c3, %c0_19, %c0_20] : memref<4x128x128xf32, #tpu.memory_space<vmem>>, vector<1x128x128xf32>
    %29 = vector.shape_cast %28 : vector<1x128x128xf32> to vector<128x128xf32>
    %cst_21 = arith.constant dense<0.000000e+00> : vector<8x128xf32>
    %30 = tpu.matmul %27, %29, %cst_21 {dimension_numbers = #tpu.dot_dimension_numbers<[1], [0], [0], [1], [0, 0, 1, 1], [], []>} : vector<8x128xf32>, vector<128x128xf32>, vector<8x128xf32> -> vector<8x128xf32>
    %c3_22 = arith.constant 3 : index
    %c0_23 = arith.constant 0 : index
    %31 = vector.load %arg3[%c3_22, %c0_23] : memref<4x128xf32, #tpu.memory_space<vmem>>, vector<1x128xf32>
    %32 = vector.broadcast %31 : vector<1x128xf32> to vector<8x128xf32>
    %33 = arith.addf %30, %32 : vector<8x128xf32>
    %34 = vector.extract_strided_slice %33 {offsets = [0, 0], sizes = [8, 8], strides = [1, 1]} : vector<8x128xf32> to vector<8x8xf32>
    %35 = vector.extract_strided_slice %33 {offsets = [0, 8], sizes = [8, 8], strides = [1, 1]} : vector<8x128xf32> to vector<8x8xf32>
    %36 = math.exp %34 : vector<8x8xf32>
    %37 = arith.mulf %36, %0 : vector<8x8xf32>
    %38 = arith.addf %37, %35 : vector<8x8xf32>
    %c0_24 = arith.constant 0 : index
    %c0_25 = arith.constant 0 : index
    %39 = vector.load %arg4[%c0_24, %c0_25] : memref<8x8xf32, #tpu.memory_space<vmem>>, vector<8x8xf32>
    tpu.vector_store %arg4[%c0_24, %c0_25], %38 {strides = array<i32>} : memref<8x8xf32, #tpu.memory_space<vmem>>, vector<8x8xf32>,
    %cst_26 = arith.constant dense<0.000000e+00> : vector<8xf32>
    %40 = vector.multi_reduction <add>, %34, %cst_26 [1] : vector<8x8xf32> to vector<8xf32>
    %41 = vector.shape_cast %40 : vector<8xf32> to vector<8x1xf32>
    %c0_27 = arith.constant 0 : index
    %c0_28 = arith.constant 0 : index
    %42 = vector.load %arg5[%c0_27, %c0_28] : memref<8x1xf32, #tpu.memory_space<vmem>>, vector<8x1xf32>
    tpu.vector_store %arg5[%c0_27, %c0_28], %41 {strides = array<i32>} : memref<8x1xf32, #tpu.memory_space<vmem>>, vector<8x1xf32>,
    return
  }
  func.func @transform_0(%arg0: i32) -> (i32, i32) {
    %c0_i32 = arith.constant 0 : i32
    %c0_i32_0 = arith.constant 0 : i32
    return %arg0, %c0_i32 : i32, i32
  }
  func.func @transform_1(%arg0: i32) -> (i32, i32, i32) {
    %c0_i32 = arith.constant 0 : i32
    %c0_i32_0 = arith.constant 0 : i32
    %c0_i32_1 = arith.constant 0 : i32
    %c0_i32_2 = arith.constant 0 : i32
    return %c0_i32, %c0_i32_0, %c0_i32_1 : i32, i32, i32
  }
  func.func @transform_2(%arg0: i32) -> (i32, i32) {
    %c0_i32 = arith.constant 0 : i32
    %c0_i32_0 = arith.constant 0 : i32
    %c0_i32_1 = arith.constant 0 : i32
    return %c0_i32, %c0_i32_0 : i32, i32
  }
  func.func @transform_3(%arg0: i32) -> (i32, i32) {
    %c0_i32 = arith.constant 0 : i32
    %c0_i32_0 = arith.constant 0 : i32
    return %arg0, %c0_i32 : i32, i32
  }
  func.func @transform_4(%arg0: i32) -> (i32, i32) {
    %c0_i32 = arith.constant 0 : i32
    %c0_i32_0 = arith.constant 0 : i32
    return %arg0, %c0_i32 : i32, i32
  }
}

</mosaic_0001>

<llo_original>
// kernel: tpu_custom_call.1
$region0: #{tpu_custom_call.1}
  #allocation0 [shape = 'u32[]', space=smem, size = 0x4, offset = 0x4, fixed_abs, tag = 'smem constant byte address 0x4 - core index']
  #allocation1 [shape = 'u32[144,128]{1,0:T(1,128)}', space=vmem, size = 0x12000, scoped, tag = 'internal scratch']
  %s0 = inlined_call_operand.hbm [shape: f32[8,8], index: 0, kind: input, shape index: {}]
  %s1 = inlined_call_operand.hbm [shape: f32[4,128,128], index: 1, kind: input, shape index: {}]
  %s2 = inlined_call_operand.vmem [shape: f32[4,128], index: 2, kind: input, shape index: {}]
  %s3 = inlined_call_operand.hbm [shape: f32[8,8], index: 3, kind: output, shape index: {0}]
  %s4 = inlined_call_operand.vmem [shape: f32[8,1], index: 4, kind: output, shape index: {1}]
  %5 = xla_tuple %s3, %s4
  %s6 = sld [smem:[#allocation0]]
  $region38: #{tpu_custom_call.1} parent=0
    _
  %s8 = ssub.s32 1, %s6
  %s9 = scalar_select 0, %s8, %s6
  $region1: #{tpu_custom_call.1} parent=0
    #allocation2 [shape = 'u8[4096]{0}', space=vmem, size = 0x1000, scoped, tag = 'input window, operand 0, single buffered']
    #allocation3 [shape = 's32[1]{0}', space=sflag, size = 0x4, scoped, tag = 'scoped memory for tpu_custom_call.1']
    #allocation4 [shape = 's32[1]{0}', space=sflag, size = 0x4, scoped, tag = 'scoped memory for tpu_custom_call.1']
    #allocation5 [shape = 'u8[262144]{0}', space=vmem, size = 0x40000, scoped, tag = 'input window, operand 1, single buffered']
    #allocation6 [shape = 's32[1]{0}', space=sflag, size = 0x4, scoped, tag = 'scoped memory for tpu_custom_call.1']
    #allocation7 [shape = 'u8[4096]{0}', space=vmem, size = 0x1000, scoped, tag = 'output window, operand 0, single buffered']
    %10 = vsyncpa [#allocation3], 0
    %11 = vsyncpa [#allocation6], 0
    %12 = vsyncpa [#allocation4], 0
    // Predicated region
    $region2: #{tpu_custom_call.1} parent=1 // pred_check
      _
    $region3: #{tpu_custom_call.1} parent=1 // pred_check_branch
      %14 = sbr.rel (0) target = $region5
    $region4: #{tpu_custom_call.1} parent=1 // pred_region
      %s16 = ssub.s32 128, 128
      %17 = vsyncadd [#allocation3], %s16
      %s19 = sshll.u32 [#allocation2], 4
      %s20 = int_to_ptr.vmem [resolvable:$true] %s19
      %22 = dma.hbm_to_vmem [thread:$0]  %s0, 128, %s20, [#allocation3]
    $region5: #{tpu_custom_call.1} parent=1 // pred_fallthru
      _
    // Predicated region
    $region6: #{tpu_custom_call.1} parent=1 // pred_check
      _
    $region7: #{tpu_custom_call.1} parent=1 // pred_check_branch
      %24 = sbr.rel (0) target = $region9
    $region8: #{tpu_custom_call.1} parent=1 // pred_region
      %s26 = ssub.s32 8192, 8192
      %27 = vsyncadd [#allocation6], %s26
      %s28 = sshll.u32 [#allocation5], 4
      %s29 = int_to_ptr.vmem [resolvable:$true] %s28
      %34 = dma.hbm_to_vmem [thread:$0]  %s1, 8192, %s29, [#allocation6], 128, 128, 8
    $region9: #{tpu_custom_call.1} parent=1 // pred_fallthru
      _
    // Predicated region
    $region10: #{tpu_custom_call.1} parent=1 // pred_check
      _
    $region11: #{tpu_custom_call.1} parent=1 // pred_check_branch
      %36 = sbr.rel (0) target = $region13
    $region12: #{tpu_custom_call.1} parent=1 // pred_region
      _
    $region13: #{tpu_custom_call.1} parent=1 // pred_fallthru
      _
    // Predicated region
    $region14: #{tpu_custom_call.1} parent=1 // pred_check
      _
    $region15: #{tpu_custom_call.1} parent=1 // pred_check_branch
      %38 = sbr.rel (0) target = $region17
    $region16: #{tpu_custom_call.1} parent=1 // pred_region
      %39 = dma.done [#allocation3], 128
    $region17: #{tpu_custom_call.1} parent=1 // pred_fallthru
      _
    // Predicated region
    $region18: #{tpu_custom_call.1} parent=1 // pred_check
      _
    $region19: #{tpu_custom_call.1} parent=1 // pred_check_branch
      %41 = sbr.rel (0) target = $region21
    $region20: #{tpu_custom_call.1} parent=1 // pred_region
      %42 = dma.done [#allocation6], 8192
    $region21: #{tpu_custom_call.1} parent=1 // pred_fallthru
      _
    %v43 = vld [vmem:[#allocation2] sm:$0xff]
    %v44 = vld [vmem:[#allocation5] sm:$0xff]
    %v45 = vld [vmem:[%s2] sm:$0x1]
    %v46 = vlaneseq
    %v47 = vshrl.u32 %v46, 7
    %v48 = vsub.s32 0, %v47
    %v49 = vrot.slane %v45, %v48
    %vm50 = vcmask 64512
    %v52 = vsel %vm50, %v43, 0
    %54 = vmatprep.subr.mxu0 0.0
    %55 = vmatpush1.msra.mxu0 %v44
    %56 = vmatprep.subr.mxu0 0.0
    %57 = vmatpush1.msra.mxu0 0.0
    %58 = vmatprep.subr.mxu0 0.0
    %59 = vmatpush1.msra.mxu0 0.0
    %60 = vmatprep.subr.mxu0 0.0
    %61 = vmatpush1.msra.mxu0 0.0
    %62 = vmatprep.subr.mxu0 0.0
    %63 = vmatpush1.msra.mxu0 0.0
    %64 = vmatprep.subr.mxu0 0.0
    %65 = vmatpush1.msra.mxu0 0.0
    %66 = vmatprep.subr.mxu0 0.0
    %67 = vmatpush1.msra.mxu0 0.0
    %68 = vmatprep.subr.mxu0 0.0
    %69 = vmatpush1.msra.mxu0 0.0
    %70 = vmatprep.subr.mxu0 0.0
    %71 = vmatpush1.msra.mxu0 0.0
    %72 = vmatprep.subr.mxu0 0.0
    %73 = vmatpush1.msra.mxu0 0.0
    %74 = vmatprep.subr.mxu0 0.0
    %75 = vmatpush1.msra.mxu0 0.0
    %76 = vmatprep.subr.mxu0 0.0
    %77 = vmatpush1.msra.mxu0 0.0
    %78 = vmatprep.subr.mxu0 0.0
    %79 = vmatpush1.msra.mxu0 0.0
    %80 = vmatprep.subr.mxu0 0.0
    %81 = vmatpush1.msra.mxu0 0.0
    %82 = vmatprep.subr.mxu0 0.0
    %83 = vmatpush1.msra.mxu0 0.0
    %84 = vmatprep.subr.mxu0 0.0
    %85 = vmatpush1.msra.mxu0 0.0
    %86 = vmatprep.subr.mxu0 0.0
    %87 = vmatpush1.msra.mxu0 0.0
    %88 = vmatprep.subr.mxu0 0.0
    %89 = vmatpush1.msra.mxu0 0.0
    %90 = vmatprep.subr.mxu0 0.0
    %91 = vmatpush1.msra.mxu0 0.0
    %92 = vmatprep.subr.mxu0 0.0
    %93 = vmatpush1.msra.mxu0 0.0
    %94 = vmatprep.subr.mxu0 0.0
    %95 = vmatpush1.msra.mxu0 0.0
    %96 = vmatprep.subr.mxu0 0.0
    %97 = vmatpush1.msra.mxu0 0.0
    %98 = vmatprep.subr.mxu0 0.0
    %99 = vmatpush1.msra.mxu0 0.0
    %100 = vmatprep.subr.mxu0 0.0
    %101 = vmatpush1.msra.mxu0 0.0
    %102 = vmatprep.subr.mxu0 0.0
    %103 = vmatpush1.msra.mxu0 0.0
    %104 = vmatprep.subr.mxu0 0.0
    %105 = vmatpush1.msra.mxu0 0.0
    %106 = vmatprep.subr.mxu0 0.0
    %107 = vmatpush1.msra.mxu0 0.0
    %108 = vmatprep.subr.mxu0 0.0
    %109 = vmatpush1.msra.mxu0 0.0
    %110 = vmatprep.subr.mxu0 0.0
    %111 = vmatpush1.msra.mxu0 0.0
    %112 = vmatprep.subr.mxu0 0.0
    %113 = vmatpush1.msra.mxu0 0.0
    %114 = vmatprep.subr.mxu0 0.0
    %115 = vmatpush1.msra.mxu0 0.0
    %116 = vmatprep.subr.mxu0 0.0
    %117 = vmatpush1.msra.mxu0 0.0
    %118 = vmatprep.mubr.f32.mxu0 0.0
    %119 = vmatmul.mubr.f32.gmra.mrb[0].mxu0 %v52
    %v120 = vpop.f32.mrb[0].mxu0
    %v121 = vadd.f32 %v49, %v120
    %v122 = vpop.f32.mrb[0].mxu0
    %123 = vdwg.mxu0
    %v124 = vmul.f32 %v121, 0.2
    %v125 = vmax.f32 %v121, %v124
    %s126 = scalar_lea.vmem [#allocation5], 128
    %v127 = vld [vmem:[%s126] sm:$0xff]
    %v128 = vld [vmem:[%s126 + $0x8] sm:$0xff]
    %v129 = vld [vmem:[%s126 + $0x10] sm:$0xff]
    %v130 = vld [vmem:[%s126 + $0x18] sm:$0xff]
    %v131 = vld [vmem:[%s126 + $0x20] sm:$0xff]
    %v132 = vld [vmem:[%s126 + $0x28] sm:$0xff]
    %v133 = vld [vmem:[%s126 + $0x30] sm:$0xff]
    %v134 = vld [vmem:[%s126 + $0x38] sm:$0xff]
    %v135 = vld [vmem:[%s126 + $0x40] sm:$0xff]
    %v136 = vld [vmem:[%s126 + $0x48] sm:$0xff]
    %v137 = vld [vmem:[%s126 + $0x50] sm:$0xff]
    %v138 = vld [vmem:[%s126 + $0x58] sm:$0xff]
    %v139 = vld [vmem:[%s126 + $0x60] sm:$0xff]
    %v140 = vld [vmem:[%s126 + $0x68] sm:$0xff]
    %v141 = vld [vmem:[%s126 + $0x70] sm:$0xff]
    %v142 = vld [vmem:[%s126 + $0x78] sm:$0xff]
    %v143 = vld [vmem:[%s2 + $0x1] sm:$0x1]
    %v144 = vlaneseq
    %v145 = vshrl.u32 %v144, 7
    %v146 = vsub.s32 0, %v145
    %v147 = vrot.slane %v143, %v146
    %148 = vmatprep.subr.mxu0 0.0
    %149 = vmatpush1.msra.mxu0 %v127
    %150 = vmatprep.subr.mxu0 0.0
    %151 = vmatpush1.msra.mxu0 %v128
    %152 = vmatprep.subr.mxu0 0.0
    %153 = vmatpush1.msra.mxu0 %v129
    %154 = vmatprep.subr.mxu0 0.0
    %155 = vmatpush1.msra.mxu0 %v130
    %156 = vmatprep.subr.mxu0 0.0
    %157 = vmatpush1.msra.mxu0 %v131
    %158 = vmatprep.subr.mxu0 0.0
    %159 = vmatpush1.msra.mxu0 %v132
    %160 = vmatprep.subr.mxu0 0.0
    %161 = vmatpush1.msra.mxu0 %v133
    %162 = vmatprep.subr.mxu0 0.0
    %163 = vmatpush1.msra.mxu0 %v134
    %164 = vmatprep.subr.mxu0 0.0
    %165 = vmatpush1.msra.mxu0 %v135
    %166 = vmatprep.subr.mxu0 0.0
    %167 = vmatpush1.msra.mxu0 %v136
    %168 = vmatprep.subr.mxu0 0.0
    %169 = vmatpush1.msra.mxu0 %v137
    %170 = vmatprep.subr.mxu0 0.0
    %171 = vmatpush1.msra.mxu0 %v138
    %172 = vmatprep.subr.mxu0 0.0
    %173 = vmatpush1.msra.mxu0 %v139
    %174 = vmatprep.subr.mxu0 0.0
    %175 = vmatpush1.msra.mxu0 %v140
    %176 = vmatprep.subr.mxu0 0.0
    %177 = vmatpush1.msra.mxu0 %v141
    %178 = vmatprep.subr.mxu0 0.0
    %179 = vmatpush1.msra.mxu0 %v142
    %180 = vmatprep.subr.mxu0 0.0
    %181 = vmatpush1.msra.mxu0 0.0
    %182 = vmatprep.subr.mxu0 0.0
    %183 = vmatpush1.msra.mxu0 0.0
    %184 = vmatprep.subr.mxu0 0.0
    %185 = vmatpush1.msra.mxu0 0.0
    %186 = vmatprep.subr.mxu0 0.0
    %187 = vmatpush1.msra.mxu0 0.0
    %188 = vmatprep.subr.mxu0 0.0
    %189 = vmatpush1.msra.mxu0 0.0
    %190 = vmatprep.subr.mxu0 0.0
    %191 = vmatpush1.msra.mxu0 0.0
    %192 = vmatprep.subr.mxu0 0.0
    %193 = vmatpush1.msra.mxu0 0.0
    %194 = vmatprep.subr.mxu0 0.0
    %195 = vmatpush1.msra.mxu0 0.0
    %196 = vmatprep.subr.mxu0 0.0
    %197 = vmatpush1.msra.mxu0 0.0
    %198 = vmatprep.subr.mxu0 0.0
    %199 = vmatpush1.msra.mxu0 0.0
    %200 = vmatprep.subr.mxu0 0.0
    %201 = vmatpush1.msra.mxu0 0.0
    %202 = vmatprep.subr.mxu0 0.0
    %203 = vmatpush1.msra.mxu0 0.0
    %204 = vmatprep.subr.mxu0 0.0
    %205 = vmatpush1.msra.mxu0 0.0
    %206 = vmatprep.subr.mxu0 0.0
    %207 = vmatpush1.msra.mxu0 0.0
    %208 = vmatprep.subr.mxu0 0.0
    %209 = vmatpush1.msra.mxu0 0.0
    %210 = vmatprep.subr.mxu0 0.0
    %211 = vmatpush1.msra.mxu0 0.0
    %212 = vmatprep.mubr.f32.mxu0 0.0
    %213 = vmatmul.mubr.f32.gmra.mrb[0].mxu0 %v125
    %v214 = vpop.f32.mrb[0].mxu0
    %v215 = vadd.f32 %v147, %v214
    %v216 = vpop.f32.mrb[0].mxu0
    %217 = vdwg.mxu0
    %v218 = vmul.f32 %v215, 0.2
    %v219 = vmax.f32 %v215, %v218
    %s220 = scalar_lea.vmem [#allocation5], 256
    %v221 = vld [vmem:[%s220] sm:$0xff]
    %v222 = vld [vmem:[%s220 + $0x8] sm:$0xff]
    %v223 = vld [vmem:[%s220 + $0x10] sm:$0xff]
    %v224 = vld [vmem:[%s220 + $0x18] sm:$0xff]
    %v225 = vld [vmem:[%s220 + $0x20] sm:$0xff]
    %v226 = vld [vmem:[%s220 + $0x28] sm:$0xff]
    %v227 = vld [vmem:[%s220 + $0x30] sm:$0xff]
    %v228 = vld [vmem:[%s220 + $0x38] sm:$0xff]
    %v229 = vld [vmem:[%s220 + $0x40] sm:$0xff]
    %v230 = vld [vmem:[%s220 + $0x48] sm:$0xff]
    %v231 = vld [vmem:[%s220 + $0x50] sm:$0xff]
    %v232 = vld [vmem:[%s220 + $0x58] sm:$0xff]
    %v233 = vld [vmem:[%s220 + $0x60] sm:$0xff]
    %v234 = vld [vmem:[%s220 + $0x68] sm:$0xff]
    %v235 = vld [vmem:[%s220 + $0x70] sm:$0xff]
    %v236 = vld [vmem:[%s220 + $0x78] sm:$0xff]
    %v237 = vld [vmem:[%s2 + $0x2] sm:$0x1]
    %v238 = vlaneseq
    %v239 = vshrl.u32 %v238, 7
    %v240 = vsub.s32 0, %v239
    %v241 = vrot.slane %v237, %v240
    %242 = vmatprep.subr.mxu0 0.0
    %243 = vmatpush1.msra.mxu0 %v221
    %244 = vmatprep.subr.mxu0 0.0
    %245 = vmatpush1.msra.mxu0 %v222
    %246 = vmatprep.subr.mxu0 0.0
    %247 = vmatpush1.msra.mxu0 %v223
    %248 = vmatprep.subr.mxu0 0.0
    %249 = vmatpush1.msra.mxu0 %v224
    %250 = vmatprep.subr.mxu0 0.0
    %251 = vmatpush1.msra.mxu0 %v225
    %252 = vmatprep.subr.mxu0 0.0
    %253 = vmatpush1.msra.mxu0 %v226
    %254 = vmatprep.subr.mxu0 0.0
    %255 = vmatpush1.msra.mxu0 %v227
    %256 = vmatprep.subr.mxu0 0.0
    %257 = vmatpush1.msra.mxu0 %v228
    %258 = vmatprep.subr.mxu0 0.0
    %259 = vmatpush1.msra.mxu0 %v229
    %260 = vmatprep.subr.mxu0 0.0
    %261 = vmatpush1.msra.mxu0 %v230
    %262 = vmatprep.subr.mxu0 0.0
    %263 = vmatpush1.msra.mxu0 %v231
    %264 = vmatprep.subr.mxu0 0.0
    %265 = vmatpush1.msra.mxu0 %v232
    %266 = vmatprep.subr.mxu0 0.0
    %267 = vmatpush1.msra.mxu0 %v233
    %268 = vmatprep.subr.mxu0 0.0
    %269 = vmatpush1.msra.mxu0 %v234
    %270 = vmatprep.subr.mxu0 0.0
    %271 = vmatpush1.msra.mxu0 %v235
    %272 = vmatprep.subr.mxu0 0.0
    %273 = vmatpush1.msra.mxu0 %v236
    %274 = vmatprep.subr.mxu0 0.0
    %275 = vmatpush1.msra.mxu0 0.0
    %276 = vmatprep.subr.mxu0 0.0
    %277 = vmatpush1.msra.mxu0 0.0
    %278 = vmatprep.subr.mxu0 0.0
    %279 = vmatpush1.msra.mxu0 0.0
    %280 = vmatprep.subr.mxu0 0.0
    %281 = vmatpush1.msra.mxu0 0.0
    %282 = vmatprep.subr.mxu0 0.0
    %283 = vmatpush1.msra.mxu0 0.0
    %284 = vmatprep.subr.mxu0 0.0
    %285 = vmatpush1.msra.mxu0 0.0
    %286 = vmatprep.subr.mxu0 0.0
    %287 = vmatpush1.msra.mxu0 0.0
    %288 = vmatprep.subr.mxu0 0.0
    %289 = vmatpush1.msra.mxu0 0.0
    %290 = vmatprep.subr.mxu0 0.0
    %291 = vmatpush1.msra.mxu0 0.0
    %292 = vmatprep.subr.mxu0 0.0
    %293 = vmatpush1.msra.mxu0 0.0
    %294 = vmatprep.subr.mxu0 0.0
    %295 = vmatpush1.msra.mxu0 0.0
    %296 = vmatprep.subr.mxu0 0.0
    %297 = vmatpush1.msra.mxu0 0.0
    %298 = vmatprep.subr.mxu0 0.0
    %299 = vmatpush1.msra.mxu0 0.0
    %300 = vmatprep.subr.mxu0 0.0
    %301 = vmatpush1.msra.mxu0 0.0
    %302 = vmatprep.subr.mxu0 0.0
    %303 = vmatpush1.msra.mxu0 0.0
    %304 = vmatprep.subr.mxu0 0.0
    %305 = vmatpush1.msra.mxu0 0.0
    %306 = vmatprep.mubr.f32.mxu0 0.0
    %307 = vmatmul.mubr.f32.gmra.mrb[0].mxu0 %v219
    %v308 = vpop.f32.mrb[0].mxu0
    %v309 = vadd.f32 %v241, %v308
    %v310 = vpop.f32.mrb[0].mxu0
    %311 = vdwg.mxu0
    %v312 = vmul.f32 %v309, 0.2
    %v313 = vmax.f32 %v309, %v312
    %s314 = scalar_lea.vmem [#allocation5], 384
    %v315 = vld [vmem:[%s314] sm:$0xff]
    %v316 = vld [vmem:[%s314 + $0x8] sm:$0xff]
    %v317 = vld [vmem:[%s314 + $0x10] sm:$0xff]
    %v318 = vld [vmem:[%s314 + $0x18] sm:$0xff]
    %v319 = vld [vmem:[%s314 + $0x20] sm:$0xff]
    %v320 = vld [vmem:[%s314 + $0x28] sm:$0xff]
    %v321 = vld [vmem:[%s314 + $0x30] sm:$0xff]
    %v322 = vld [vmem:[%s314 + $0x38] sm:$0xff]
    %v323 = vld [vmem:[%s314 + $0x40] sm:$0xff]
    %v324 = vld [vmem:[%s314 + $0x48] sm:$0xff]
    %v325 = vld [vmem:[%s314 + $0x50] sm:$0xff]
    %v326 = vld [vmem:[%s314 + $0x58] sm:$0xff]
    %v327 = vld [vmem:[%s314 + $0x60] sm:$0xff]
    %v328 = vld [vmem:[%s314 + $0x68] sm:$0xff]
    %v329 = vld [vmem:[%s314 + $0x70] sm:$0xff]
    %v330 = vld [vmem:[%s314 + $0x78] sm:$0xff]
    %v331 = vld [vmem:[%s2 + $0x3] sm:$0x1]
    %v332 = vlaneseq
    %v333 = vshrl.u32 %v332, 7
    %v334 = vsub.s32 0, %v333
    %v335 = vrot.slane %v331, %v334
    %336 = vmatprep.subr.mxu0 0.0
    %337 = vmatpush1.msra.mxu0 %v315
    %338 = vmatprep.subr.mxu0 0.0
    %339 = vmatpush1.msra.mxu0 %v316
    %340 = vmatprep.subr.mxu0 0.0
    %341 = vmatpush1.msra.mxu0 %v317
    %342 = vmatprep.subr.mxu0 0.0
    %343 = vmatpush1.msra.mxu0 %v318
    %344 = vmatprep.subr.mxu0 0.0
    %345 = vmatpush1.msra.mxu0 %v319
    %346 = vmatprep.subr.mxu0 0.0
    %347 = vmatpush1.msra.mxu0 %v320
    %348 = vmatprep.subr.mxu0 0.0
    %349 = vmatpush1.msra.mxu0 %v321
    %350 = vmatprep.subr.mxu0 0.0
    %351 = vmatpush1.msra.mxu0 %v322
    %352 = vmatprep.subr.mxu0 0.0
    %353 = vmatpush1.msra.mxu0 %v323
    %354 = vmatprep.subr.mxu0 0.0
    %355 = vmatpush1.msra.mxu0 %v324
    %356 = vmatprep.subr.mxu0 0.0
    %357 = vmatpush1.msra.mxu0 %v325
    %358 = vmatprep.subr.mxu0 0.0
    %359 = vmatpush1.msra.mxu0 %v326
    %360 = vmatprep.subr.mxu0 0.0
    %361 = vmatpush1.msra.mxu0 %v327
    %362 = vmatprep.subr.mxu0 0.0
    %363 = vmatpush1.msra.mxu0 %v328
    %364 = vmatprep.subr.mxu0 0.0
    %365 = vmatpush1.msra.mxu0 %v329
    %366 = vmatprep.subr.mxu0 0.0
    %367 = vmatpush1.msra.mxu0 %v330
    %368 = vmatprep.subr.mxu0 0.0
    %369 = vmatpush1.msra.mxu0 0.0
    %370 = vmatprep.subr.mxu0 0.0
    %371 = vmatpush1.msra.mxu0 0.0
    %372 = vmatprep.subr.mxu0 0.0
    %373 = vmatpush1.msra.mxu0 0.0
    %374 = vmatprep.subr.mxu0 0.0
    %375 = vmatpush1.msra.mxu0 0.0
    %376 = vmatprep.subr.mxu0 0.0
    %377 = vmatpush1.msra.mxu0 0.0
    %378 = vmatprep.subr.mxu0 0.0
    %379 = vmatpush1.msra.mxu0 0.0
    %380 = vmatprep.subr.mxu0 0.0
    %381 = vmatpush1.msra.mxu0 0.0
    %382 = vmatprep.subr.mxu0 0.0
    %383 = vmatpush1.msra.mxu0 0.0
    %384 = vmatprep.subr.mxu0 0.0
    %385 = vmatpush1.msra.mxu0 0.0
    %386 = vmatprep.subr.mxu0 0.0
    %387 = vmatpush1.msra.mxu0 0.0
    %388 = vmatprep.subr.mxu0 0.0
    %389 = vmatpush1.msra.mxu0 0.0
    %390 = vmatprep.subr.mxu0 0.0
    %391 = vmatpush1.msra.mxu0 0.0
    %392 = vmatprep.subr.mxu0 0.0
    %393 = vmatpush1.msra.mxu0 0.0
    %394 = vmatprep.subr.mxu0 0.0
    %395 = vmatpush1.msra.mxu0 0.0
    %396 = vmatprep.subr.mxu0 0.0
    %397 = vmatpush1.msra.mxu0 0.0
    %398 = vmatprep.subr.mxu0 0.0
    %399 = vmatpush1.msra.mxu0 0.0
    %400 = vmatprep.mubr.f32.mxu0 0.0
    %401 = vmatmul.mubr.f32.gmra.mrb[0].mxu0 %v313
    %v402 = vpop.f32.mrb[0].mxu0
    %v403 = vadd.f32 %v335, %v402
    %v404 = vpop.f32.mrb[0].mxu0
    %405 = vdwg.mxu0
    %v406 = vmul.f32 %v403, 1.442695
    %v407 = vpow.pop %v406
    %v408 = vmul.f32 %v407, %v43
    %410 = vrot.lane.b32.xlu0 %v403, 120
    %v411 = vpop.permute.xlu0 %410
    %v413 = vadd.f32 %v408, %v411
    %414 = vst.msk [vmem:[#allocation7] sm:$0xff] %vm50, %v413
    %v415 = vsel %vm50, %v403, 0.0
    %416 = vadd.xlane.f32.xlu0 %v415
    %v417 = vpop.xlane.xlu0 %416
    %vm418 = vcmask 7168
    %419 = vst.msk [vmem:[%s4] sm:$0xff] %vm418, %v417
    // Predicated region
    $region22: #{tpu_custom_call.1} parent=1 // pred_check
      _
    $region23: #{tpu_custom_call.1} parent=1 // pred_check_branch
      %421 = sbr.rel (0) target = $region25
    $region24: #{tpu_custom_call.1} parent=1 // pred_region
      %s423 = ssub.s32 128, 128
      %424 = vsyncadd [#allocation4], %s423
      %s426 = sshll.u32 [#allocation7], 4
      %s427 = int_to_ptr.vmem [resolvable:$true] %s426
      %429 = dma.vmem_to_hbm [thread:$0]  %s427, 128, %s3, [#allocation4]
    $region25: #{tpu_custom_call.1} parent=1 // pred_fallthru
      _
    // Predicated region
    $region26: #{tpu_custom_call.1} parent=1 // pred_check
      _
    $region27: #{tpu_custom_call.1} parent=1 // pred_check_branch
      %431 = sbr.rel (0) target = $region29
    $region28: #{tpu_custom_call.1} parent=1 // pred_region
      _
    $region29: #{tpu_custom_call.1} parent=1 // pred_fallthru
      _
    // Predicated region
    $region30: #{tpu_custom_call.1} parent=1 // pred_check
      _
    $region31: #{tpu_custom_call.1} parent=1 // pred_check_branch
      %433 = sbr.rel (0) target = $region33
    $region32: #{tpu_custom_call.1} parent=1 // pred_region
      %434 = dma.done [#allocation4], 128
    $region33: #{tpu_custom_call.1} parent=1 // pred_fallthru
      _
    // Predicated region
    $region34: #{tpu_custom_call.1} parent=1 // pred_check
      _
    $region35: #{tpu_custom_call.1} parent=1 // pred_check_branch
      %436 = sbr.rel (0) target = $region37
    $region36: #{tpu_custom_call.1} parent=1 // pred_region
      _
    $region37: #{tpu_custom_call.1} parent=1 // pred_fallthru
      _
    %437 = vsyncpa [#allocation3], 1
    %438 = vsyncpa [#allocation6], 1
    %439 = vsyncpa [#allocation4], 1

</llo_original>
